<compile_context>
chip_gen: v7x
topology: tpu7x:2x2x1
jax: 0.10.0
libtpu: 0.0.40
codegen_flags: <defaults>
</compile_context>

<pallas_src>
import functools

import jax
import jax.numpy as jnp
from jax.experimental import pallas as pl
from jax.experimental.pallas import tpu as pltpu


def _round_up(x: int, m: int) -> int:
    return (x + m - 1) // m * m


def _cdiv(a: int, b: int) -> int:
    return (a + b - 1) // b


def khar_kan_kernel(w1_ref, w2_ref, b_ref, x_ref, o_ref, h_ref, *,
                    num_layers, in_dim, out_dim):
    """Fused KharKAN forward over one (features, tb) batch-column tile.

    Layout: features on sublanes, batch on lanes (lane-dense I/O).

    w1_ref / w2_ref : (L, FP, FP)   folded per-layer weights (mixture applied)
    b_ref           : (L, FP, 1)    per-layer bias (lane-broadcast)
    x_ref           : (in_dim, tb)  input batch columns
    o_ref           : (out_dim, tb) output batch columns
    h_ref           : (FP, tb)      VMEM scratch for sublane-padded activations
    """
    # Widen the input from in_dim to FP sublanes inside VMEM (never in HBM).
    h_ref[...] = jnp.zeros_like(h_ref)
    h_ref[0:in_dim, :] = x_ref[...]
    h = h_ref[...]                                     # (FP, tb) f32
    for l in range(num_layers):                        # L is tiny -> unrolled
        h = (jnp.dot(w1_ref[l], h, preferred_element_type=jnp.float32)
             + jnp.dot(w2_ref[l], h * h, preferred_element_type=jnp.float32)
             + b_ref[l])                               # (FP, 1) broadcast over lanes
    o_ref[...] = h[0:out_dim, :]


def prepare_khar_kan_params(params):
    """Fold the softmax activation mixture into the linear weights.

    Parameter-only work: call ONCE per parameter update, not per forward call.
    Returns stacked, sublane-padded folded weights ready for the kernel.
    """
    dims = [int(params[0]["weight"].shape[1])] + [int(p["weight"].shape[0])
                                                  for p in params]
    feat_pad = _round_up(max(dims), 8)
    # TODO(synk): very wide layers (feat_pad >> 512) would want a K/N-tiled
    # accumulator path; the KharKAN defaults (2, 8, 3, 1) only need FP = 8.
    w1s, w2s, bs = [], [], []
    for p in params:
        a = jax.nn.softmax(jnp.asarray(p["act_logits"], jnp.float32), axis=1)  # (in, 3)
        w = jnp.asarray(p["weight"], jnp.float32)                              # (out, in)
        odim, idim = w.shape
        w1 = jnp.zeros((feat_pad, feat_pad), jnp.float32).at[:odim, :idim].set(
            w * a[:, 0][None, :])
        w2 = jnp.zeros((feat_pad, feat_pad), jnp.float32).at[:odim, :idim].set(
            w * a[:, 1][None, :])
        b = jnp.zeros((feat_pad, 1), jnp.float32).at[:odim, 0].set(
            jnp.asarray(p["bias"], jnp.float32))
        w1s.append(w1)
        w2s.append(w2)
        bs.append(b)
    return {
        "W1": jnp.stack(w1s),        # (L, FP, FP)
        "W2": jnp.stack(w2s),        # (L, FP, FP)
        "B": jnp.stack(bs),          # (L, FP, 1)
        "in_dim": dims[0],
        "out_dim": dims[-1],
        "feat_pad": feat_pad,
    }


def khar_kan_forward(x, folded):
    """Full KharKAN forward as one fused Pallas kernel (transposed layout)."""
    x = jnp.asarray(x, jnp.float32)
    B, in0 = x.shape
    assert in0 == folded["in_dim"]
    W1, W2, Bv = folded["W1"], folded["W2"], folded["B"]
    L, FP, _ = W1.shape
    out_dim = folded["out_dim"]

    # Batch sits on the lane axis: pick a large 128-aligned batch tile to
    # amortize per-step overhead, but keep >= 2 grid steps for v7x's two
    # TensorCores whenever the batch is big enough.
    n_groups = _cdiv(B, 128)                                # 128-lane groups
    groups_per_tile = max(1, min(64, _cdiv(n_groups, 2)))   # <= 8192 lanes/tile
    tb = 128 * groups_per_tile
    B_pad = _round_up(B, tb)

    # Narrow transposed input (in0 rows x B_pad lanes) — only the real
    # ~8 B / batch element payload, no 128-wide padding materialized in HBM.
    x_t = jnp.zeros((in0, B_pad), jnp.float32).at[:, :B].set(x.T)

    kernel = functools.partial(khar_kan_kernel, num_layers=L,
                               in_dim=in0, out_dim=out_dim)

    out_t = pl.pallas_call(
        kernel,
        out_shape=jax.ShapeDtypeStruct((out_dim, B_pad), jnp.float32),
        grid_spec=pltpu.PrefetchScalarGridSpec(
            num_scalar_prefetch=0,
            grid=(B_pad // tb,),
            in_specs=[
                # Folded params: same (tiny, ~2 KiB) block at every grid step.
                pl.BlockSpec((L, FP, FP), lambda i: (0, 0, 0)),
                pl.BlockSpec((L, FP, FP), lambda i: (0, 0, 0)),
                pl.BlockSpec((L, FP, 1), lambda i: (0, 0, 0)),
                # Input: tile over batch columns, lane-dense.
                pl.BlockSpec((in0, tb), lambda i: (0, i)),
            ],
            out_specs=pl.BlockSpec((out_dim, tb), lambda i: (0, i)),
            scratch_shapes=[pltpu.VMEM((FP, tb), jnp.float32)],
        ),
        compiler_params=pltpu.CompilerParams(
            dimension_semantics=("parallel",),
        ),
    )(W1, W2, Bv, x_t)

    return out_t[:, :B].T                                   # (B, out_dim)


def init_khar_kan_params(key, layers=(2, 8, 3, 1)):
    """Deterministic parameter init matching the shapes in KharKAN.__init__."""
    params = []
    for i in range(len(layers) - 1):
        in_dim, out_dim = layers[i], layers[i + 1]
        key, kw, kb = jax.random.split(key, 3)
        bound = 1.0 / jnp.sqrt(jnp.float32(in_dim))
        weight = jax.random.uniform(kw, (out_dim, in_dim), jnp.float32,
                                    minval=-bound, maxval=bound)
        bias = jax.random.uniform(kb, (out_dim,), jnp.float32,
                                  minval=-bound, maxval=bound)
        act_logits = jnp.zeros((in_dim, 3), jnp.float32)  # nn.Parameter(torch.zeros)
        params.append({"act_logits": act_logits, "weight": weight, "bias": bias})
    return params


def khar_kan_reference(x, params):
    """Pure-JAX reference mirroring the PyTorch forward (for verification)."""
    x = jnp.asarray(x, jnp.float32)
    for p in params:
        a = jax.nn.softmax(p["act_logits"], axis=1)            # (in, 3)
        y = jnp.stack([x, x * x, jnp.zeros_like(x)], axis=2)   # (B, in, 3)
        v = jnp.sum(y * a[None], axis=2)                       # (B, in)
        x = v @ p["weight"].T + p["bias"]
    return x


if __name__ == "__main__":
    key = jax.random.PRNGKey(0)
    layers = (2, 8, 3, 1)

    kx, kp, ka = jax.random.split(key, 3)
    batch = 16
    x = jax.random.normal(kx, (batch, layers[0]), jnp.float32)

    params = init_khar_kan_params(kp, layers)
    # Perturb act_logits (like .anneal()) so the softmax mixture is non-uniform
    # and the folded-weight path is verified non-trivially.
    for p in params:
        ka, sub = jax.random.split(ka)
        p["act_logits"] = p["act_logits"] + 0.3 * jax.random.normal(
            sub, p["act_logits"].shape, jnp.float32)

    folded = prepare_khar_kan_params(params)   # once per parameter update
    out = khar_kan_forward(x, folded)
    out = jax.block_until_ready(out)

    ref = khar_kan_reference(x, params)
    assert out.shape == (batch, layers[-1]), (out.shape, (batch, layers[-1]))
    assert jnp.allclose(out, ref, atol=1e-4, rtol=1e-4), "mismatch vs reference"

    print("KERNEL_OK")
</pallas_src>

<mosaic_0001>
module attributes {stable_mosaic.version = 11 : i64} {
  func.func @khar_kan_kernel(%arg0: i32, %arg1: memref<3x8x8xf32, #tpu.memory_space<vmem>>, %arg2: memref<3x8x8xf32, #tpu.memory_space<vmem>>, %arg3: memref<3x8x1xf32, #tpu.memory_space<vmem>>, %arg4: memref<2x128xf32, #tpu.memory_space<vmem>>, %arg5: memref<1x128xf32, #tpu.memory_space<vmem>>, %arg6: memref<8x128xf32, #tpu.memory_space<vmem>>) attributes {dimension_semantics = [#tpu.dimension_semantics<parallel>], iteration_bounds = array<i64: 1>, scalar_prefetch = 0 : i64, scratch_operands = 1 : i64, tpu.core_type = #tpu.core_type<tc>, window_params = [{pipeline_mode = #tpu.pipeline_mode<synchronous>, transform_indices = @transform_0, window_bounds = array<i64: 3, 8, 8>}, {pipeline_mode = #tpu.pipeline_mode<synchronous>, transform_indices = @transform_1, window_bounds = array<i64: 3, 8, 8>}, {pipeline_mode = #tpu.pipeline_mode<synchronous>, transform_indices = @transform_2, window_bounds = array<i64: 3, 8, 1>}, {transform_indices = @transform_3, window_bounds = array<i64: 2, 128>}, {transform_indices = @transform_4, window_bounds = array<i64: 1, 128>}]} {
    %cst = arith.constant 0.000000e+00 : f32
    %0 = vector.broadcast %cst : f32 to vector<8x128xf32>
    %c0 = arith.constant 0 : index
    %c0_0 = arith.constant 0 : index
    %1 = vector.load %arg6[%c0, %c0_0] : memref<8x128xf32, #tpu.memory_space<vmem>>, vector<8x128xf32>
    tpu.vector_store %arg6[%c0, %c0_0], %0 {strides = array<i32>} : memref<8x128xf32, #tpu.memory_space<vmem>>, vector<8x128xf32>,
    %c0_1 = arith.constant 0 : index
    %c0_2 = arith.constant 0 : index
    %2 = vector.load %arg4[%c0_1, %c0_2] : memref<2x128xf32, #tpu.memory_space<vmem>>, vector<2x128xf32>
    %c0_3 = arith.constant 0 : index
    %c0_4 = arith.constant 0 : index
    %3 = vector.load %arg6[%c0_3, %c0_4] : memref<8x128xf32, #tpu.memory_space<vmem>>, vector<2x128xf32>
    tpu.vector_store %arg6[%c0_3, %c0_4], %2 {strides = array<i32>} : memref<8x128xf32, #tpu.memory_space<vmem>>, vector<2x128xf32>,
    %c0_5 = arith.constant 0 : index
    %c0_6 = arith.constant 0 : index
    %4 = vector.load %arg6[%c0_5, %c0_6] : memref<8x128xf32, #tpu.memory_space<vmem>>, vector<8x128xf32>
    %c0_7 = arith.constant 0 : index
    %c0_8 = arith.constant 0 : index
    %c0_9 = arith.constant 0 : index
    %5 = vector.load %arg1[%c0_7, %c0_8, %c0_9] : memref<3x8x8xf32, #tpu.memory_space<vmem>>, vector<1x8x8xf32>
    %6 = vector.shape_cast %5 : vector<1x8x8xf32> to vector<8x8xf32>
    %cst_10 = arith.constant dense<0.000000e+00> : vector<8x128xf32>
    %7 = tpu.matmul %6, %4, %cst_10 {dimension_numbers = #tpu.dot_dimension_numbers<[1], [0], [0], [1], [0, 0, 1, 1], [], []>} : vector<8x8xf32>, vector<8x128xf32>, vector<8x128xf32> -> vector<8x128xf32>
    %c0_11 = arith.constant 0 : index
    %c0_12 = arith.constant 0 : index
    %c0_13 = arith.constant 0 : index
    %8 = vector.load %arg2[%c0_11, %c0_12, %c0_13] : memref<3x8x8xf32, #tpu.memory_space<vmem>>, vector<1x8x8xf32>
    %9 = vector.shape_cast %8 : vector<1x8x8xf32> to vector<8x8xf32>
    %10 = arith.mulf %4, %4 : vector<8x128xf32>
    %cst_14 = arith.constant dense<0.000000e+00> : vector<8x128xf32>
    %11 = tpu.matmul %9, %10, %cst_14 {dimension_numbers = #tpu.dot_dimension_numbers<[1], [0], [0], [1], [0, 0, 1, 1], [], []>} : vector<8x8xf32>, vector<8x128xf32>, vector<8x128xf32> -> vector<8x128xf32>
    %12 = arith.addf %7, %11 : vector<8x128xf32>
    %c0_15 = arith.constant 0 : index
    %c0_16 = arith.constant 0 : index
    %c0_17 = arith.constant 0 : index
    %13 = vector.load %arg3[%c0_15, %c0_16, %c0_17] : memref<3x8x1xf32, #tpu.memory_space<vmem>>, vector<1x8x1xf32>
    %14 = vector.shape_cast %13 : vector<1x8x1xf32> to vector<8x1xf32>
    %15 = vector.broadcast %14 : vector<8x1xf32> to vector<8x128xf32>
    %16 = arith.addf %12, %15 : vector<8x128xf32>
    %c1 = arith.constant 1 : index
    %c0_18 = arith.constant 0 : index
    %c0_19 = arith.constant 0 : index
    %17 = vector.load %arg1[%c1, %c0_18, %c0_19] : memref<3x8x8xf32, #tpu.memory_space<vmem>>, vector<1x8x8xf32>
    %18 = vector.shape_cast %17 : vector<1x8x8xf32> to vector<8x8xf32>
    %cst_20 = arith.constant dense<0.000000e+00> : vector<8x128xf32>
    %19 = tpu.matmul %18, %16, %cst_20 {dimension_numbers = #tpu.dot_dimension_numbers<[1], [0], [0], [1], [0, 0, 1, 1], [], []>} : vector<8x8xf32>, vector<8x128xf32>, vector<8x128xf32> -> vector<8x128xf32>
    %c1_21 = arith.constant 1 : index
    %c0_22 = arith.constant 0 : index
    %c0_23 = arith.constant 0 : index
    %20 = vector.load %arg2[%c1_21, %c0_22, %c0_23] : memref<3x8x8xf32, #tpu.memory_space<vmem>>, vector<1x8x8xf32>
    %21 = vector.shape_cast %20 : vector<1x8x8xf32> to vector<8x8xf32>
    %22 = arith.mulf %16, %16 : vector<8x128xf32>
    %cst_24 = arith.constant dense<0.000000e+00> : vector<8x128xf32>
    %23 = tpu.matmul %21, %22, %cst_24 {dimension_numbers = #tpu.dot_dimension_numbers<[1], [0], [0], [1], [0, 0, 1, 1], [], []>} : vector<8x8xf32>, vector<8x128xf32>, vector<8x128xf32> -> vector<8x128xf32>
    %24 = arith.addf %19, %23 : vector<8x128xf32>
    %c1_25 = arith.constant 1 : index
    %c0_26 = arith.constant 0 : index
    %c0_27 = arith.constant 0 : index
    %25 = vector.load %arg3[%c1_25, %c0_26, %c0_27] : memref<3x8x1xf32, #tpu.memory_space<vmem>>, vector<1x8x1xf32>
    %26 = vector.shape_cast %25 : vector<1x8x1xf32> to vector<8x1xf32>
    %27 = vector.broadcast %26 : vector<8x1xf32> to vector<8x128xf32>
    %28 = arith.addf %24, %27 : vector<8x128xf32>
    %c2 = arith.constant 2 : index
    %c0_28 = arith.constant 0 : index
    %c0_29 = arith.constant 0 : index
    %29 = vector.load %arg1[%c2, %c0_28, %c0_29] : memref<3x8x8xf32, #tpu.memory_space<vmem>>, vector<1x8x8xf32>
    %30 = vector.shape_cast %29 : vector<1x8x8xf32> to vector<8x8xf32>
    %cst_30 = arith.constant dense<0.000000e+00> : vector<8x128xf32>
    %31 = tpu.matmul %30, %28, %cst_30 {dimension_numbers = #tpu.dot_dimension_numbers<[1], [0], [0], [1], [0, 0, 1, 1], [], []>} : vector<8x8xf32>, vector<8x128xf32>, vector<8x128xf32> -> vector<8x128xf32>
    %c2_31 = arith.constant 2 : index
    %c0_32 = arith.constant 0 : index
    %c0_33 = arith.constant 0 : index
    %32 = vector.load %arg2[%c2_31, %c0_32, %c0_33] : memref<3x8x8xf32, #tpu.memory_space<vmem>>, vector<1x8x8xf32>
    %33 = vector.shape_cast %32 : vector<1x8x8xf32> to vector<8x8xf32>
    %34 = arith.mulf %28, %28 : vector<8x128xf32>
    %cst_34 = arith.constant dense<0.000000e+00> : vector<8x128xf32>
    %35 = tpu.matmul %33, %34, %cst_34 {dimension_numbers = #tpu.dot_dimension_numbers<[1], [0], [0], [1], [0, 0, 1, 1], [], []>} : vector<8x8xf32>, vector<8x128xf32>, vector<8x128xf32> -> vector<8x128xf32>
    %36 = arith.addf %31, %35 : vector<8x128xf32>
    %c2_35 = arith.constant 2 : index
    %c0_36 = arith.constant 0 : index
    %c0_37 = arith.constant 0 : index
    %37 = vector.load %arg3[%c2_35, %c0_36, %c0_37] : memref<3x8x1xf32, #tpu.memory_space<vmem>>, vector<1x8x1xf32>
    %38 = vector.shape_cast %37 : vector<1x8x1xf32> to vector<8x1xf32>
    %39 = vector.broadcast %38 : vector<8x1xf32> to vector<8x128xf32>
    %40 = arith.addf %36, %39 : vector<8x128xf32>
    %41 = vector.extract_strided_slice %40 {offsets = [0, 0], sizes = [1, 128], strides = [1, 1]} : vector<8x128xf32> to vector<1x128xf32>
    %c0_38 = arith.constant 0 : index
    %c0_39 = arith.constant 0 : index
    %42 = vector.load %arg5[%c0_38, %c0_39] : memref<1x128xf32, #tpu.memory_space<vmem>>, vector<1x128xf32>
    tpu.vector_store %arg5[%c0_38, %c0_39], %41 {strides = array<i32>} : memref<1x128xf32, #tpu.memory_space<vmem>>, vector<1x128xf32>,
    return
  }
  func.func @transform_0(%arg0: i32) -> (i32, i32, i32) {
    %c0_i32 = arith.constant 0 : i32
    %c0_i32_0 = arith.constant 0 : i32
    %c0_i32_1 = arith.constant 0 : i32
    %c0_i32_2 = arith.constant 0 : i32
    return %c0_i32, %c0_i32_0, %c0_i32_1 : i32, i32, i32
  }
  func.func @transform_1(%arg0: i32) -> (i32, i32, i32) {
    %c0_i32 = arith.constant 0 : i32
    %c0_i32_0 = arith.constant 0 : i32
    %c0_i32_1 = arith.constant 0 : i32
    %c0_i32_2 = arith.constant 0 : i32
    return %c0_i32, %c0_i32_0, %c0_i32_1 : i32, i32, i32
  }
  func.func @transform_2(%arg0: i32) -> (i32, i32, i32) {
    %c0_i32 = arith.constant 0 : i32
    %c0_i32_0 = arith.constant 0 : i32
    %c0_i32_1 = arith.constant 0 : i32
    %c0_i32_2 = arith.constant 0 : i32
    return %c0_i32, %c0_i32_0, %c0_i32_1 : i32, i32, i32
  }
  func.func @transform_3(%arg0: i32) -> (i32, i32) {
    %c0_i32 = arith.constant 0 : i32
    %c0_i32_0 = arith.constant 0 : i32
    return %c0_i32, %arg0 : i32, i32
  }
  func.func @transform_4(%arg0: i32) -> (i32, i32) {
    %c0_i32 = arith.constant 0 : i32
    %c0_i32_0 = arith.constant 0 : i32
    return %c0_i32, %arg0 : i32, i32
  }
}

</mosaic_0001>

<llo_original>
// kernel: tpu_custom_call.1
$region0: #{tpu_custom_call.1}
  #allocation0 [shape = 'u32[]', space=smem, size = 0x4, offset = 0x4, fixed_abs, tag = 'smem constant byte address 0x4 - core index']
  #allocation1 [shape = 'u32[144,128]{1,0:T(1,128)}', space=vmem, size = 0x12000, scoped, tag = 'internal scratch']
  #allocation2 [shape = 'f32[8,128]{1,0:T(8,128)}', space=vmem, size = 0x1000, scoped, tag = 'scratch operand']
  %s0 = inlined_call_operand.vmem [shape: f32[3,8,8], index: 0, kind: input, shape index: {}]
  %s1 = inlined_call_operand.hbm [shape: f32[3,8,8], index: 1, kind: input, shape index: {}]
  %s2 = inlined_call_operand.vmem [shape: f32[3,8,1], index: 2, kind: input, shape index: {}]
  %s3 = inlined_call_operand.vmem [shape: f32[2,128], index: 3, kind: input, shape index: {}]
  %s4 = inlined_call_operand.hbm [shape: f32[1,128], index: 4, kind: output, shape index: {}]
  %s5 = sld [smem:[#allocation0]]
  $region30: #{tpu_custom_call.1} parent=0
    _
  %s7 = ssub.s32 1, %s5
  %s8 = scalar_select 0, %s7, %s5
  $region1: #{tpu_custom_call.1} parent=0
    #allocation3 [shape = 'u8[12288]{0}', space=vmem, size = 0x3000, scoped, tag = 'input window, operand 1, single buffered']
    #allocation4 [shape = 's32[1]{0}', space=sflag, size = 0x4, scoped, tag = 'scoped memory for tpu_custom_call.1']
    #allocation5 [shape = 's32[1]{0}', space=sflag, size = 0x4, scoped, tag = 'scoped memory for tpu_custom_call.1']
    #allocation6 [shape = 'u8[512]{0}', space=vmem, size = 0x400, scoped, tag = 'output window, operand 0, single buffered']
    %9 = vsyncpa [#allocation4], 0
    %10 = vsyncpa [#allocation5], 0
    // Predicated region
    $region2: #{tpu_custom_call.1} parent=1 // pred_check
      _
    $region3: #{tpu_custom_call.1} parent=1 // pred_check_branch
      %12 = sbr.rel (0) target = $region5
    $region4: #{tpu_custom_call.1} parent=1 // pred_region
      _
    $region5: #{tpu_custom_call.1} parent=1 // pred_fallthru
      _
    // Predicated region
    $region6: #{tpu_custom_call.1} parent=1 // pred_check
      _
    $region7: #{tpu_custom_call.1} parent=1 // pred_check_branch
      %14 = sbr.rel (0) target = $region9
    $region8: #{tpu_custom_call.1} parent=1 // pred_region
      %s16 = ssub.s32 384, 384
      %17 = vsyncadd [#allocation4], %s16
      %s18 = sshll.u32 [#allocation3], 4
      %s19 = int_to_ptr.vmem [resolvable:$true] %s18
      %24 = dma.hbm_to_vmem [thread:$0]  %s1, 384, %s19, [#allocation4], 128, 128, 8
    $region9: #{tpu_custom_call.1} parent=1 // pred_fallthru
      _
    // Predicated region
    $region10: #{tpu_custom_call.1} parent=1 // pred_check
      _
    $region11: #{tpu_custom_call.1} parent=1 // pred_check_branch
      %26 = sbr.rel (0) target = $region13
    $region12: #{tpu_custom_call.1} parent=1 // pred_region
      _
    $region13: #{tpu_custom_call.1} parent=1 // pred_fallthru
      _
    // Predicated region
    $region14: #{tpu_custom_call.1} parent=1 // pred_check
      _
    $region15: #{tpu_custom_call.1} parent=1 // pred_check_branch
      %28 = sbr.rel (0) target = $region17
    $region16: #{tpu_custom_call.1} parent=1 // pred_region
      _
    $region17: #{tpu_custom_call.1} parent=1 // pred_fallthru
      _
    // Predicated region
    $region18: #{tpu_custom_call.1} parent=1 // pred_check
      _
    $region19: #{tpu_custom_call.1} parent=1 // pred_check_branch
      %30 = sbr.rel (0) target = $region21
    $region20: #{tpu_custom_call.1} parent=1 // pred_region
      %31 = dma.done [#allocation4], 384
    $region21: #{tpu_custom_call.1} parent=1 // pred_fallthru
      _
    %32 = vst [vmem:[#allocation2] sm:$0xff] 0.0
    %v33 = vld [vmem:[%s3] sm:$0x3]
    %34 = vst [vmem:[#allocation2] sm:$0x3] %v33
    %v35 = vld [vmem:[#allocation2] sm:$0xff]
    %v36 = vld [vmem:[%s0] sm:$0xff]
    %v37 = vld [vmem:[#allocation3] sm:$0xff]
    %v38 = vmul.f32 %v35, %v35
    %vm39 = vcmask 64512
    %v41 = vsel %vm39, %v37, 0
    %43 = vmatprep.subr.mxu0 0.0
    %44 = vmatpush1.msra.mxu0 %v38
    %45 = vmatprep.subr.mxu0 0.0
    %46 = vmatpush1.msra.mxu0 0.0
    %47 = vmatprep.subr.mxu0 0.0
    %48 = vmatpush1.msra.mxu0 0.0
    %49 = vmatprep.subr.mxu0 0.0
    %50 = vmatpush1.msra.mxu0 0.0
    %51 = vmatprep.subr.mxu0 0.0
    %52 = vmatpush1.msra.mxu0 0.0
    %53 = vmatprep.subr.mxu0 0.0
    %54 = vmatpush1.msra.mxu0 0.0
    %55 = vmatprep.subr.mxu0 0.0
    %56 = vmatpush1.msra.mxu0 0.0
    %57 = vmatprep.subr.mxu0 0.0
    %58 = vmatpush1.msra.mxu0 0.0
    %59 = vmatprep.subr.mxu0 0.0
    %60 = vmatpush1.msra.mxu0 0.0
    %61 = vmatprep.subr.mxu0 0.0
    %62 = vmatpush1.msra.mxu0 0.0
    %63 = vmatprep.subr.mxu0 0.0
    %64 = vmatpush1.msra.mxu0 0.0
    %65 = vmatprep.subr.mxu0 0.0
    %66 = vmatpush1.msra.mxu0 0.0
    %67 = vmatprep.subr.mxu0 0.0
    %68 = vmatpush1.msra.mxu0 0.0
    %69 = vmatprep.subr.mxu0 0.0
    %70 = vmatpush1.msra.mxu0 0.0
    %71 = vmatprep.subr.mxu0 0.0
    %72 = vmatpush1.msra.mxu0 0.0
    %73 = vmatprep.subr.mxu0 0.0
    %74 = vmatpush1.msra.mxu0 0.0
    %75 = vmatprep.subr.mxu0 0.0
    %76 = vmatpush1.msra.mxu0 0.0
    %77 = vmatprep.subr.mxu0 0.0
    %78 = vmatpush1.msra.mxu0 0.0
    %79 = vmatprep.subr.mxu0 0.0
    %80 = vmatpush1.msra.mxu0 0.0
    %81 = vmatprep.subr.mxu0 0.0
    %82 = vmatpush1.msra.mxu0 0.0
    %83 = vmatprep.subr.mxu0 0.0
    %84 = vmatpush1.msra.mxu0 0.0
    %85 = vmatprep.subr.mxu0 0.0
    %86 = vmatpush1.msra.mxu0 0.0
    %87 = vmatprep.subr.mxu0 0.0
    %88 = vmatpush1.msra.mxu0 0.0
    %89 = vmatprep.subr.mxu0 0.0
    %90 = vmatpush1.msra.mxu0 0.0
    %91 = vmatprep.subr.mxu0 0.0
    %92 = vmatpush1.msra.mxu0 0.0
    %93 = vmatprep.subr.mxu0 0.0
    %94 = vmatpush1.msra.mxu0 0.0
    %95 = vmatprep.subr.mxu0 0.0
    %96 = vmatpush1.msra.mxu0 0.0
    %97 = vmatprep.subr.mxu0 0.0
    %98 = vmatpush1.msra.mxu0 0.0
    %99 = vmatprep.subr.mxu0 0.0
    %100 = vmatpush1.msra.mxu0 0.0
    %101 = vmatprep.subr.mxu0 0.0
    %102 = vmatpush1.msra.mxu0 0.0
    %103 = vmatprep.subr.mxu0 0.0
    %104 = vmatpush1.msra.mxu0 0.0
    %105 = vmatprep.subr.mxu0 0.0
    %106 = vmatpush1.msra.mxu0 0.0
    %107 = vmatprep.mubr.f32.mxu0 0.0
    %108 = vmatmul.mubr.f32.gmra.mrb[0].mxu0 %v41
    %v109 = vpop.f32.mrb[0].mxu0
    %v110 = vadd.f32 0.0, %v109
    %v111 = vpop.f32.mrb[0].mxu0
    %112 = vdwg.mxu0
    %v114 = vsel %vm39, %v36, 0
    %116 = vmatprep.subr.mxu0 0.0
    %117 = vmatpush1.msra.mxu0 %v35
    %118 = vmatprep.subr.mxu0 0.0
    %119 = vmatpush1.msra.mxu0 0.0
    %120 = vmatprep.subr.mxu0 0.0
    %121 = vmatpush1.msra.mxu0 0.0
    %122 = vmatprep.subr.mxu0 0.0
    %123 = vmatpush1.msra.mxu0 0.0
    %124 = vmatprep.subr.mxu0 0.0
    %125 = vmatpush1.msra.mxu0 0.0
    %126 = vmatprep.subr.mxu0 0.0
    %127 = vmatpush1.msra.mxu0 0.0
    %128 = vmatprep.subr.mxu0 0.0
    %129 = vmatpush1.msra.mxu0 0.0
    %130 = vmatprep.subr.mxu0 0.0
    %131 = vmatpush1.msra.mxu0 0.0
    %132 = vmatprep.subr.mxu0 0.0
    %133 = vmatpush1.msra.mxu0 0.0
    %134 = vmatprep.subr.mxu0 0.0
    %135 = vmatpush1.msra.mxu0 0.0
    %136 = vmatprep.subr.mxu0 0.0
    %137 = vmatpush1.msra.mxu0 0.0
    %138 = vmatprep.subr.mxu0 0.0
    %139 = vmatpush1.msra.mxu0 0.0
    %140 = vmatprep.subr.mxu0 0.0
    %141 = vmatpush1.msra.mxu0 0.0
    %142 = vmatprep.subr.mxu0 0.0
    %143 = vmatpush1.msra.mxu0 0.0
    %144 = vmatprep.subr.mxu0 0.0
    %145 = vmatpush1.msra.mxu0 0.0
    %146 = vmatprep.subr.mxu0 0.0
    %147 = vmatpush1.msra.mxu0 0.0
    %148 = vmatprep.subr.mxu0 0.0
    %149 = vmatpush1.msra.mxu0 0.0
    %150 = vmatprep.subr.mxu0 0.0
    %151 = vmatpush1.msra.mxu0 0.0
    %152 = vmatprep.subr.mxu0 0.0
    %153 = vmatpush1.msra.mxu0 0.0
    %154 = vmatprep.subr.mxu0 0.0
    %155 = vmatpush1.msra.mxu0 0.0
    %156 = vmatprep.subr.mxu0 0.0
    %157 = vmatpush1.msra.mxu0 0.0
    %158 = vmatprep.subr.mxu0 0.0
    %159 = vmatpush1.msra.mxu0 0.0
    %160 = vmatprep.subr.mxu0 0.0
    %161 = vmatpush1.msra.mxu0 0.0
    %162 = vmatprep.subr.mxu0 0.0
    %163 = vmatpush1.msra.mxu0 0.0
    %164 = vmatprep.subr.mxu0 0.0
    %165 = vmatpush1.msra.mxu0 0.0
    %166 = vmatprep.subr.mxu0 0.0
    %167 = vmatpush1.msra.mxu0 0.0
    %168 = vmatprep.subr.mxu0 0.0
    %169 = vmatpush1.msra.mxu0 0.0
    %170 = vmatprep.subr.mxu0 0.0
    %171 = vmatpush1.msra.mxu0 0.0
    %172 = vmatprep.subr.mxu0 0.0
    %173 = vmatpush1.msra.mxu0 0.0
    %174 = vmatprep.subr.mxu0 0.0
    %175 = vmatpush1.msra.mxu0 0.0
    %176 = vmatprep.subr.mxu0 0.0
    %177 = vmatpush1.msra.mxu0 0.0
    %178 = vmatprep.subr.mxu0 0.0
    %179 = vmatpush1.msra.mxu0 0.0
    %180 = vmatprep.mubr.f32.mxu0 0.0
    %181 = vmatmul.mubr.f32.gmra.mrb[0].mxu0 %v114
    %v182 = vpop.f32.mrb[0].mxu0
    %v183 = vadd.f32 %v110, %v182
    %v184 = vpop.f32.mrb[0].mxu0
    %185 = vdwg.mxu0
    %v186 = vld [vmem:[%s2] sm:$0xff]
    %188 = vset.pattern.permute.xlu0 0
    %189 = vperm.xlu0 %188, %v186
    %v190 = vpop.permute.xlu0 %189
    %v192 = vadd.f32 %v183, %v190
    %s193 = scalar_lea.vmem %s0, 8
    %v194 = vld [vmem:[%s193] sm:$0xff]
    %s195 = scalar_lea.vmem [#allocation3], 8
    %v196 = vld [vmem:[%s195] sm:$0xff]
    %v197 = vmul.f32 %v192, %v192
    %v199 = vsel %vm39, %v196, 0
    %201 = vmatprep.subr.mxu0 0.0
    %202 = vmatpush1.msra.mxu0 %v197
    %203 = vmatprep.subr.mxu0 0.0
    %204 = vmatpush1.msra.mxu0 0.0
    %205 = vmatprep.subr.mxu0 0.0
    %206 = vmatpush1.msra.mxu0 0.0
    %207 = vmatprep.subr.mxu0 0.0
    %208 = vmatpush1.msra.mxu0 0.0
    %209 = vmatprep.subr.mxu0 0.0
    %210 = vmatpush1.msra.mxu0 0.0
    %211 = vmatprep.subr.mxu0 0.0
    %212 = vmatpush1.msra.mxu0 0.0
    %213 = vmatprep.subr.mxu0 0.0
    %214 = vmatpush1.msra.mxu0 0.0
    %215 = vmatprep.subr.mxu0 0.0
    %216 = vmatpush1.msra.mxu0 0.0
    %217 = vmatprep.subr.mxu0 0.0
    %218 = vmatpush1.msra.mxu0 0.0
    %219 = vmatprep.subr.mxu0 0.0
    %220 = vmatpush1.msra.mxu0 0.0
    %221 = vmatprep.subr.mxu0 0.0
    %222 = vmatpush1.msra.mxu0 0.0
    %223 = vmatprep.subr.mxu0 0.0
    %224 = vmatpush1.msra.mxu0 0.0
    %225 = vmatprep.subr.mxu0 0.0
    %226 = vmatpush1.msra.mxu0 0.0
    %227 = vmatprep.subr.mxu0 0.0
    %228 = vmatpush1.msra.mxu0 0.0
    %229 = vmatprep.subr.mxu0 0.0
    %230 = vmatpush1.msra.mxu0 0.0
    %231 = vmatprep.subr.mxu0 0.0
    %232 = vmatpush1.msra.mxu0 0.0
    %233 = vmatprep.subr.mxu0 0.0
    %234 = vmatpush1.msra.mxu0 0.0
    %235 = vmatprep.subr.mxu0 0.0
    %236 = vmatpush1.msra.mxu0 0.0
    %237 = vmatprep.subr.mxu0 0.0
    %238 = vmatpush1.msra.mxu0 0.0
    %239 = vmatprep.subr.mxu0 0.0
    %240 = vmatpush1.msra.mxu0 0.0
    %241 = vmatprep.subr.mxu0 0.0
    %242 = vmatpush1.msra.mxu0 0.0
    %243 = vmatprep.subr.mxu0 0.0
    %244 = vmatpush1.msra.mxu0 0.0
    %245 = vmatprep.subr.mxu0 0.0
    %246 = vmatpush1.msra.mxu0 0.0
    %247 = vmatprep.subr.mxu0 0.0
    %248 = vmatpush1.msra.mxu0 0.0
    %249 = vmatprep.subr.mxu0 0.0
    %250 = vmatpush1.msra.mxu0 0.0
    %251 = vmatprep.subr.mxu0 0.0
    %252 = vmatpush1.msra.mxu0 0.0
    %253 = vmatprep.subr.mxu0 0.0
    %254 = vmatpush1.msra.mxu0 0.0
    %255 = vmatprep.subr.mxu0 0.0
    %256 = vmatpush1.msra.mxu0 0.0
    %257 = vmatprep.subr.mxu0 0.0
    %258 = vmatpush1.msra.mxu0 0.0
    %259 = vmatprep.subr.mxu0 0.0
    %260 = vmatpush1.msra.mxu0 0.0
    %261 = vmatprep.subr.mxu0 0.0
    %262 = vmatpush1.msra.mxu0 0.0
    %263 = vmatprep.subr.mxu0 0.0
    %264 = vmatpush1.msra.mxu0 0.0
    %265 = vmatprep.mubr.f32.mxu0 0.0
    %266 = vmatmul.mubr.f32.gmra.mrb[0].mxu0 %v199
    %v267 = vpop.f32.mrb[0].mxu0
    %v268 = vadd.f32 0.0, %v267
    %v269 = vpop.f32.mrb[0].mxu0
    %270 = vdwg.mxu0
    %v272 = vsel %vm39, %v194, 0
    %274 = vmatprep.subr.mxu0 0.0
    %275 = vmatpush1.msra.mxu0 %v192
    %276 = vmatprep.subr.mxu0 0.0
    %277 = vmatpush1.msra.mxu0 0.0
    %278 = vmatprep.subr.mxu0 0.0
    %279 = vmatpush1.msra.mxu0 0.0
    %280 = vmatprep.subr.mxu0 0.0
    %281 = vmatpush1.msra.mxu0 0.0
    %282 = vmatprep.subr.mxu0 0.0
    %283 = vmatpush1.msra.mxu0 0.0
    %284 = vmatprep.subr.mxu0 0.0
    %285 = vmatpush1.msra.mxu0 0.0
    %286 = vmatprep.subr.mxu0 0.0
    %287 = vmatpush1.msra.mxu0 0.0
    %288 = vmatprep.subr.mxu0 0.0
    %289 = vmatpush1.msra.mxu0 0.0
    %290 = vmatprep.subr.mxu0 0.0
    %291 = vmatpush1.msra.mxu0 0.0
    %292 = vmatprep.subr.mxu0 0.0
    %293 = vmatpush1.msra.mxu0 0.0
    %294 = vmatprep.subr.mxu0 0.0
    %295 = vmatpush1.msra.mxu0 0.0
    %296 = vmatprep.subr.mxu0 0.0
    %297 = vmatpush1.msra.mxu0 0.0
    %298 = vmatprep.subr.mxu0 0.0
    %299 = vmatpush1.msra.mxu0 0.0
    %300 = vmatprep.subr.mxu0 0.0
    %301 = vmatpush1.msra.mxu0 0.0
    %302 = vmatprep.subr.mxu0 0.0
    %303 = vmatpush1.msra.mxu0 0.0
    %304 = vmatprep.subr.mxu0 0.0
    %305 = vmatpush1.msra.mxu0 0.0
    %306 = vmatprep.subr.mxu0 0.0
    %307 = vmatpush1.msra.mxu0 0.0
    %308 = vmatprep.subr.mxu0 0.0
    %309 = vmatpush1.msra.mxu0 0.0
    %310 = vmatprep.subr.mxu0 0.0
    %311 = vmatpush1.msra.mxu0 0.0
    %312 = vmatprep.subr.mxu0 0.0
    %313 = vmatpush1.msra.mxu0 0.0
    %314 = vmatprep.subr.mxu0 0.0
    %315 = vmatpush1.msra.mxu0 0.0
    %316 = vmatprep.subr.mxu0 0.0
    %317 = vmatpush1.msra.mxu0 0.0
    %318 = vmatprep.subr.mxu0 0.0
    %319 = vmatpush1.msra.mxu0 0.0
    %320 = vmatprep.subr.mxu0 0.0
    %321 = vmatpush1.msra.mxu0 0.0
    %322 = vmatprep.subr.mxu0 0.0
    %323 = vmatpush1.msra.mxu0 0.0
    %324 = vmatprep.subr.mxu0 0.0
    %325 = vmatpush1.msra.mxu0 0.0
    %326 = vmatprep.subr.mxu0 0.0
    %327 = vmatpush1.msra.mxu0 0.0
    %328 = vmatprep.subr.mxu0 0.0
    %329 = vmatpush1.msra.mxu0 0.0
    %330 = vmatprep.subr.mxu0 0.0
    %331 = vmatpush1.msra.mxu0 0.0
    %332 = vmatprep.subr.mxu0 0.0
    %333 = vmatpush1.msra.mxu0 0.0
    %334 = vmatprep.subr.mxu0 0.0
    %335 = vmatpush1.msra.mxu0 0.0
    %336 = vmatprep.subr.mxu0 0.0
    %337 = vmatpush1.msra.mxu0 0.0
    %338 = vmatprep.mubr.f32.mxu0 0.0
    %339 = vmatmul.mubr.f32.gmra.mrb[0].mxu0 %v272
    %v340 = vpop.f32.mrb[0].mxu0
    %v341 = vadd.f32 %v268, %v340
    %v342 = vpop.f32.mrb[0].mxu0
    %343 = vdwg.mxu0
    %s344 = scalar_lea.vmem %s2, 8
    %v345 = vld [vmem:[%s344] sm:$0xff]
    %347 = vset.pattern.permute.xlu0 0
    %348 = vperm.xlu0 %347, %v345
    %v349 = vpop.permute.xlu0 %348
    %v351 = vadd.f32 %v341, %v349
    %s352 = scalar_lea.vmem %s0, 16
    %v353 = vld [vmem:[%s352] sm:$0xff]
    %s354 = scalar_lea.vmem [#allocation3], 16
    %v355 = vld [vmem:[%s354] sm:$0xff]
    %v356 = vmul.f32 %v351, %v351
    %v358 = vsel %vm39, %v355, 0
    %360 = vmatprep.subr.mxu0 0.0
    %361 = vmatpush1.msra.mxu0 %v356
    %362 = vmatprep.subr.mxu0 0.0
    %363 = vmatpush1.msra.mxu0 0.0
    %364 = vmatprep.subr.mxu0 0.0
    %365 = vmatpush1.msra.mxu0 0.0
    %366 = vmatprep.subr.mxu0 0.0
    %367 = vmatpush1.msra.mxu0 0.0
    %368 = vmatprep.subr.mxu0 0.0
    %369 = vmatpush1.msra.mxu0 0.0
    %370 = vmatprep.subr.mxu0 0.0
    %371 = vmatpush1.msra.mxu0 0.0
    %372 = vmatprep.subr.mxu0 0.0
    %373 = vmatpush1.msra.mxu0 0.0
    %374 = vmatprep.subr.mxu0 0.0
    %375 = vmatpush1.msra.mxu0 0.0
    %376 = vmatprep.subr.mxu0 0.0
    %377 = vmatpush1.msra.mxu0 0.0
    %378 = vmatprep.subr.mxu0 0.0
    %379 = vmatpush1.msra.mxu0 0.0
    %380 = vmatprep.subr.mxu0 0.0
    %381 = vmatpush1.msra.mxu0 0.0
    %382 = vmatprep.subr.mxu0 0.0
    %383 = vmatpush1.msra.mxu0 0.0
    %384 = vmatprep.subr.mxu0 0.0
    %385 = vmatpush1.msra.mxu0 0.0
    %386 = vmatprep.subr.mxu0 0.0
    %387 = vmatpush1.msra.mxu0 0.0
    %388 = vmatprep.subr.mxu0 0.0
    %389 = vmatpush1.msra.mxu0 0.0
    %390 = vmatprep.subr.mxu0 0.0
    %391 = vmatpush1.msra.mxu0 0.0
    %392 = vmatprep.subr.mxu0 0.0
    %393 = vmatpush1.msra.mxu0 0.0
    %394 = vmatprep.subr.mxu0 0.0
    %395 = vmatpush1.msra.mxu0 0.0
    %396 = vmatprep.subr.mxu0 0.0
    %397 = vmatpush1.msra.mxu0 0.0
    %398 = vmatprep.subr.mxu0 0.0
    %399 = vmatpush1.msra.mxu0 0.0
    %400 = vmatprep.subr.mxu0 0.0
    %401 = vmatpush1.msra.mxu0 0.0
    %402 = vmatprep.subr.mxu0 0.0
    %403 = vmatpush1.msra.mxu0 0.0
    %404 = vmatprep.subr.mxu0 0.0
    %405 = vmatpush1.msra.mxu0 0.0
    %406 = vmatprep.subr.mxu0 0.0
    %407 = vmatpush1.msra.mxu0 0.0
    %408 = vmatprep.subr.mxu0 0.0
    %409 = vmatpush1.msra.mxu0 0.0
    %410 = vmatprep.subr.mxu0 0.0
    %411 = vmatpush1.msra.mxu0 0.0
    %412 = vmatprep.subr.mxu0 0.0
    %413 = vmatpush1.msra.mxu0 0.0
    %414 = vmatprep.subr.mxu0 0.0
    %415 = vmatpush1.msra.mxu0 0.0
    %416 = vmatprep.subr.mxu0 0.0
    %417 = vmatpush1.msra.mxu0 0.0
    %418 = vmatprep.subr.mxu0 0.0
    %419 = vmatpush1.msra.mxu0 0.0
    %420 = vmatprep.subr.mxu0 0.0
    %421 = vmatpush1.msra.mxu0 0.0
    %422 = vmatprep.subr.mxu0 0.0
    %423 = vmatpush1.msra.mxu0 0.0
    %424 = vmatprep.mubr.f32.mxu0 0.0
    %425 = vmatmul.mubr.f32.gmra.mrb[0].mxu0 %v358
    %v426 = vpop.f32.mrb[0].mxu0
    %v427 = vadd.f32 0.0, %v426
    %v428 = vpop.f32.mrb[0].mxu0
    %429 = vdwg.mxu0
    %v431 = vsel %vm39, %v353, 0
    %433 = vmatprep.subr.mxu0 0.0
    %434 = vmatpush1.msra.mxu0 %v351
    %435 = vmatprep.subr.mxu0 0.0
    %436 = vmatpush1.msra.mxu0 0.0
    %437 = vmatprep.subr.mxu0 0.0
    %438 = vmatpush1.msra.mxu0 0.0
    %439 = vmatprep.subr.mxu0 0.0
    %440 = vmatpush1.msra.mxu0 0.0
    %441 = vmatprep.subr.mxu0 0.0
    %442 = vmatpush1.msra.mxu0 0.0
    %443 = vmatprep.subr.mxu0 0.0
    %444 = vmatpush1.msra.mxu0 0.0
    %445 = vmatprep.subr.mxu0 0.0
    %446 = vmatpush1.msra.mxu0 0.0
    %447 = vmatprep.subr.mxu0 0.0
    %448 = vmatpush1.msra.mxu0 0.0
    %449 = vmatprep.subr.mxu0 0.0
    %450 = vmatpush1.msra.mxu0 0.0
    %451 = vmatprep.subr.mxu0 0.0
    %452 = vmatpush1.msra.mxu0 0.0
    %453 = vmatprep.subr.mxu0 0.0
    %454 = vmatpush1.msra.mxu0 0.0
    %455 = vmatprep.subr.mxu0 0.0
    %456 = vmatpush1.msra.mxu0 0.0
    %457 = vmatprep.subr.mxu0 0.0
    %458 = vmatpush1.msra.mxu0 0.0
    %459 = vmatprep.subr.mxu0 0.0
    %460 = vmatpush1.msra.mxu0 0.0
    %461 = vmatprep.subr.mxu0 0.0
    %462 = vmatpush1.msra.mxu0 0.0
    %463 = vmatprep.subr.mxu0 0.0
    %464 = vmatpush1.msra.mxu0 0.0
    %465 = vmatprep.subr.mxu0 0.0
    %466 = vmatpush1.msra.mxu0 0.0
    %467 = vmatprep.subr.mxu0 0.0
    %468 = vmatpush1.msra.mxu0 0.0
    %469 = vmatprep.subr.mxu0 0.0
    %470 = vmatpush1.msra.mxu0 0.0
    %471 = vmatprep.subr.mxu0 0.0
    %472 = vmatpush1.msra.mxu0 0.0
    %473 = vmatprep.subr.mxu0 0.0
    %474 = vmatpush1.msra.mxu0 0.0
    %475 = vmatprep.subr.mxu0 0.0
    %476 = vmatpush1.msra.mxu0 0.0
    %477 = vmatprep.subr.mxu0 0.0
    %478 = vmatpush1.msra.mxu0 0.0
    %479 = vmatprep.subr.mxu0 0.0
    %480 = vmatpush1.msra.mxu0 0.0
    %481 = vmatprep.subr.mxu0 0.0
    %482 = vmatpush1.msra.mxu0 0.0
    %483 = vmatprep.subr.mxu0 0.0
    %484 = vmatpush1.msra.mxu0 0.0
    %485 = vmatprep.subr.mxu0 0.0
    %486 = vmatpush1.msra.mxu0 0.0
    %487 = vmatprep.subr.mxu0 0.0
    %488 = vmatpush1.msra.mxu0 0.0
    %489 = vmatprep.subr.mxu0 0.0
    %490 = vmatpush1.msra.mxu0 0.0
    %491 = vmatprep.subr.mxu0 0.0
    %492 = vmatpush1.msra.mxu0 0.0
    %493 = vmatprep.subr.mxu0 0.0
    %494 = vmatpush1.msra.mxu0 0.0
    %495 = vmatprep.subr.mxu0 0.0
    %496 = vmatpush1.msra.mxu0 0.0
    %497 = vmatprep.mubr.f32.mxu0 0.0
    %498 = vmatmul.mubr.f32.gmra.mrb[0].mxu0 %v431
    %v499 = vpop.f32.mrb[0].mxu0
    %v500 = vadd.f32 %v427, %v499
    %v501 = vpop.f32.mrb[0].mxu0
    %502 = vdwg.mxu0
    %s503 = scalar_lea.vmem %s2, 16
    %v504 = vld [vmem:[%s503] sm:$0xff]
    %506 = vset.pattern.permute.xlu0 0
    %507 = vperm.xlu0 %506, %v504
    %v508 = vpop.permute.xlu0 %507
    %v510 = vadd.f32 %v500, %v508
    %511 = vst [vmem:[#allocation6] sm:$0x1] %v510
    // Predicated region
    $region22: #{tpu_custom_call.1} parent=1 // pred_check
      _
    $region23: #{tpu_custom_call.1} parent=1 // pred_check_branch
      %513 = sbr.rel (0) target = $region25
    $region24: #{tpu_custom_call.1} parent=1 // pred_region
      %s515 = ssub.s32 16, 16
      %516 = vsyncadd [#allocation5], %s515
      %s518 = sshll.u32 [#allocation6], 4
      %s519 = int_to_ptr.vmem [resolvable:$true] %s518
      %521 = dma.vmem_to_hbm [thread:$0]  %s519, 16, %s4, [#allocation5]
    $region25: #{tpu_custom_call.1} parent=1 // pred_fallthru
      _
    // Predicated region
    $region26: #{tpu_custom_call.1} parent=1 // pred_check
      _
    $region27: #{tpu_custom_call.1} parent=1 // pred_check_branch
      %523 = sbr.rel (0) target = $region29
    $region28: #{tpu_custom_call.1} parent=1 // pred_region
      %524 = dma.done [#allocation5], 16
    $region29: #{tpu_custom_call.1} parent=1 // pred_fallthru
      _
    %525 = vsyncpa [#allocation4], 1
    %526 = vsyncpa [#allocation5], 1

</llo_original>
